<compile_context>
chip_gen: v6e
topology: v6e:2x2x1
jax: 0.10.0
libtpu: 0.0.40
codegen_flags: <defaults>
</compile_context>

<pallas_src>
import functools

import numpy as np
import jax
import jax.numpy as jnp
from jax.experimental import pallas as pl
from jax.experimental.pallas import tpu as pltpu


def _round_up(x, m):
    return (x + m - 1) // m * m


def _pick_hw_tile(hw, batch, max_tile=2048):
    """Largest HW tile <= max_tile that is a multiple of 128 and divides HW,
    while keeping at least 2 grid steps when possible (v7x has 2 TensorCores)."""
    if hw <= 128:
        return hw
    candidates = [t for t in range(128, min(hw, max_tile) + 1, 128) if hw % t == 0]
    if not candidates:
        return hw                      # HW not 128-divisible: single full-width block
    tile = max(candidates)
    if batch * (hw // tile) < 2:       # guarantee >= 2 grid steps for megacore sharding
        smaller = [t for t in candidates if hw // t >= 2]
        if smaller:
            tile = max(smaller)
    return tile


def _lrpc_kernel(n_keep,
                 cls_ref, loc_ref, wf_ref, bf_ref, wl_ref, bl_ref,
                 slab_ref, loc_out_ref):
    """One grid step = one (batch, HW-tile). Channel-major: W @ x, lane dim = HW.

    Inputs arrive f32 and are cast to bf16 in-register (saves a wrapper-side HBM pass).
    slab_ref rows [0:V] = vocab logits, row V = pf - logit(conf)  (mask = row > 0).
    """
    x = cls_ref[...].astype(jnp.bfloat16)   # (Ccls, thw)
    y = loc_ref[...].astype(jnp.bfloat16)   # (Cloc, thw)

    # Fused vocab + pf matmul: (Vpad, Ccls) @ (Ccls, thw) -> f32 accumulate.
    fused = jnp.dot(wf_ref[...], x, preferred_element_type=jnp.float32) + bf_ref[...]

    # Single lane-dense prefix store: vocab rows + shifted pf row.
    slab_ref[...] = fused[:n_keep, :].astype(slab_ref.dtype)

    # loc 1x1 conv: (Lout, Cloc) @ (Cloc, thw) -> (Lout, thw).
    loc_out_ref[...] = (
        jnp.dot(wl_ref[...], y, preferred_element_type=jnp.float32) + bl_ref[...]
    ).astype(loc_out_ref.dtype)


def prepare_lrpc_params(params, conf):
    """One-time prep: fuse pf into vocab weight (row V), fold logit(conf) into the pf
    bias, pad rows to a multiple of 16 (bf16 sublane packing), cast weights to bf16."""
    V, c_cls = params["w_vocab"].shape
    l_out, _ = params["w_loc"].shape
    v_pad = _round_up(V + 1, 16)
    logit_conf = float(np.log(conf / (1.0 - conf)))

    w_fused = jnp.zeros((v_pad, c_cls), jnp.float32)
    w_fused = w_fused.at[:V].set(params["w_vocab"]).at[V].set(params["w_pf"][0])
    b_fused = jnp.zeros((v_pad,), jnp.float32)
    b_fused = (b_fused.at[:V].set(params["b_vocab"])
                       .at[V].set(params["b_pf"][0] - logit_conf))

    return {
        "num_classes": V,
        "w_fused": w_fused.astype(jnp.bfloat16),        # (Vpad, Ccls)
        "b_fused": b_fused.reshape(v_pad, 1),           # (Vpad, 1) f32, pf row shifted
        "w_loc": params["w_loc"].astype(jnp.bfloat16),  # (Lout, Cloc)
        "b_loc": params["b_loc"].reshape(l_out, 1),     # (Lout, 1) f32
    }


def lrpc_head_forward(cls_feat, loc_feat, prep, max_det):
    """Mirror of LRPCHead.forward (enabled=True).

    `conf` is folded into `prep` (changing it re-runs the cheap prep, never recompiles
    the kernel). `max_det` is unused, exactly as in the PyTorch module.
    """
    del max_det
    B, c_cls, H, W = cls_feat.shape
    _, c_loc, _, _ = loc_feat.shape
    HW = H * W
    V = prep["num_classes"]
    v_pad = prep["w_fused"].shape[0]
    l_out = prep["w_loc"].shape[0]
    n_keep = V + 1

    tile_hw = _pick_hw_tile(HW, B)
    n_hw = HW // tile_hw

    # NCHW -> (B, C, HW): pure reshape, no transpose, no dtype pass (cast is in-kernel).
    cls_cm = cls_feat.reshape(B, c_cls, HW)
    loc_cm = loc_feat.reshape(B, c_loc, HW)

    kernel = functools.partial(_lrpc_kernel, n_keep)

    slab, loc_flat = pl.pallas_call(
        kernel,
        out_shape=(
            jax.ShapeDtypeStruct((B, n_keep, HW), jnp.bfloat16),  # vocab rows + pf row
            jax.ShapeDtypeStruct((B, l_out, HW), jnp.bfloat16),   # loc conv output
        ),
        grid=(B, n_hw),
        in_specs=[
            pl.BlockSpec((None, c_cls, tile_hw), lambda b, j: (b, 0, j)),
            pl.BlockSpec((None, c_loc, tile_hw), lambda b, j: (b, 0, j)),
            pl.BlockSpec((v_pad, c_cls), lambda b, j: (0, 0)),   # fused vocab+pf weight
            pl.BlockSpec((v_pad, 1), lambda b, j: (0, 0)),       # fused bias (pf shifted)
            pl.BlockSpec((l_out, c_loc), lambda b, j: (0, 0)),   # loc weight
            pl.BlockSpec((l_out, 1), lambda b, j: (0, 0)),       # loc bias
        ],
        out_specs=(
            pl.BlockSpec((None, n_keep, tile_hw), lambda b, j: (b, 0, j)),
            pl.BlockSpec((None, l_out, tile_hw), lambda b, j: (b, 0, j)),
        ),
        compiler_params=pltpu.CompilerParams(
            dimension_semantics=("parallel", "parallel"),
            vmem_limit_bytes=32 * 1024 * 1024),
    )(cls_cm, loc_cm, prep["w_fused"], prep["b_fused"], prep["w_loc"], prep["b_loc"])

    # loc output back to NCHW: pure reshape (already channel-major).
    loc_out = loc_flat.reshape(B, l_out, H, W)

    # Proposal mask from batch 0 only, exactly like PyTorch (implicit B == 1 at
    # inference); it is then applied to every batch, as the PyTorch code does.
    mask = slab[0, V, :] > 0                                   # (HW,) bool, on device

    # TODO(synk): the proposal count is data-dependent, so the selection has no
    # static-shape jit equivalent; only the tiny (HW,) bool mask is host-synced and the
    # gather stays on device. A fully-jitted serving path would use lax.top_k(max_det).
    idx = np.flatnonzero(np.asarray(mask)).astype(np.int32)
    cls_out = jnp.take(slab[:, :V, :], jnp.asarray(idx), axis=2)  # (B, V, Nsel)

    return (loc_out, cls_out), mask


def make_params(key, c_cls, c_loc, num_classes, reg_ch):
    """Weights stored channel-major, matching PyTorch conv weight (out, in) layout."""
    ks = jax.random.split(key, 6)
    s = 0.1
    return {
        "w_vocab": s * jax.random.normal(ks[0], (num_classes, c_cls), jnp.float32),
        "b_vocab": s * jax.random.normal(ks[1], (num_classes,), jnp.float32),
        "w_pf":    s * jax.random.normal(ks[2], (1, c_cls), jnp.float32),
        "b_pf":    s * jax.random.normal(ks[3], (1,), jnp.float32),
        "w_loc":   s * jax.random.normal(ks[4], (reg_ch, c_loc), jnp.float32),
        "b_loc":   s * jax.random.normal(ks[5], (reg_ch,), jnp.float32),
    }


if __name__ == "__main__":
    key = jax.random.PRNGKey(0)
    kp, kc, kl = jax.random.split(key, 3)

    B, Ccls, Cloc, H, W = 2, 32, 32, 16, 16
    num_classes, reg_ch = 16, 64          # reg_ch = 4 * reg_max
    conf, max_det = 0.45, 300

    params = make_params(kp, Ccls, Cloc, num_classes, reg_ch)
    prep = prepare_lrpc_params(params, conf)
    cls_feat = jax.random.normal(kc, (B, Ccls, H, W), jnp.float32)
    loc_feat = jax.random.normal(kl, (B, Cloc, H, W), jnp.float32)

    (loc_out, cls_out), mask = lrpc_head_forward(cls_feat, loc_feat, prep, max_det)
    jax.block_until_ready((loc_out, cls_out, mask))

    # Pure-JAX reference with the same bf16-cast operands (f32 accumulate), so the
    # comparison is apples-to-apples with the kernel's bf16 MXU math.
    HW = H * W
    x16 = cls_feat.reshape(B, Ccls, HW).astype(jnp.bfloat16).astype(jnp.float32)
    y16 = loc_feat.reshape(B, Cloc, HW).astype(jnp.bfloat16).astype(jnp.float32)
    wv = params["w_vocab"].astype(jnp.bfloat16).astype(jnp.float32)
    wp = params["w_pf"].astype(jnp.bfloat16).astype(jnp.float32)
    wl = params["w_loc"].astype(jnp.bfloat16).astype(jnp.float32)

    vocab_ref = jnp.einsum("vc,bcn->bvn", wv, x16) + params["b_vocab"][None, :, None]
    pf_ref = (wp @ x16[0] + params["b_pf"][:, None])[0]                       # (HW,)
    loc_ref = (jnp.einsum("lc,bcn->bln", wl, y16)
               + params["b_loc"][None, :, None]).reshape(B, reg_ch, H, W)

    # Same linear threshold in both kernel and reference (exact transform of
    # sigmoid(pf) > conf); tiny tolerance only for f32 accumulation-order differences.
    logit_conf = float(np.log(conf / (1.0 - conf)))
    mask_ref = pf_ref > logit_conf
    borderline = jnp.abs(pf_ref - logit_conf) < 1e-4
    assert bool(jnp.all((mask == mask_ref) | borderline)), "proposal mask mismatch"

    idx = np.flatnonzero(np.asarray(mask))
    cls_ref_sel = np.asarray(vocab_ref)[:, :, idx]

    np.testing.assert_allclose(np.asarray(cls_out.astype(jnp.float32)), cls_ref_sel,
                               rtol=2e-2, atol=2e-2)
    np.testing.assert_allclose(np.asarray(loc_out.astype(jnp.float32)),
                               np.asarray(loc_ref), rtol=2e-2, atol=2e-2)

    print("KERNEL_OK")
</pallas_src>

<mosaic_0001>
module attributes {stable_mosaic.version = 11 : i64} {
  func.func @_lrpc_kernel(%arg0: i32, %arg1: i32, %arg2: memref<1x32x256xf32, #tpu.memory_space<vmem>>, %arg3: memref<1x32x256xf32, #tpu.memory_space<vmem>>, %arg4: memref<32x32xbf16, #tpu.memory_space<vmem>>, %arg5: memref<32x1xf32, #tpu.memory_space<vmem>>, %arg6: memref<64x32xbf16, #tpu.memory_space<vmem>>, %arg7: memref<64x1xf32, #tpu.memory_space<vmem>>, %arg8: memref<1x17x256xbf16, #tpu.memory_space<vmem>>, %arg9: memref<1x64x256xbf16, #tpu.memory_space<vmem>>) attributes {dimension_semantics = [#tpu.dimension_semantics<parallel>, #tpu.dimension_semantics<parallel>], iteration_bounds = array<i64: 2, 1>, scalar_prefetch = 0 : i64, scratch_operands = 0 : i64, tpu.core_type = #tpu.core_type<tc>, window_params = [{transform_indices = @transform_0, window_bounds = array<i64: 1, 32, 256>}, {transform_indices = @transform_1, window_bounds = array<i64: 1, 32, 256>}, {pipeline_mode = #tpu.pipeline_mode<synchronous>, transform_indices = @transform_2, window_bounds = array<i64: 32, 32>}, {pipeline_mode = #tpu.pipeline_mode<synchronous>, transform_indices = @transform_3, window_bounds = array<i64: 32, 1>}, {pipeline_mode = #tpu.pipeline_mode<synchronous>, transform_indices = @transform_4, window_bounds = array<i64: 64, 32>}, {pipeline_mode = #tpu.pipeline_mode<synchronous>, transform_indices = @transform_5, window_bounds = array<i64: 64, 1>}, {transform_indices = @transform_6, window_bounds = array<i64: 1, 17, 256>}, {transform_indices = @transform_7, window_bounds = array<i64: 1, 64, 256>}]} {
    %c0 = arith.constant 0 : index
    %c0_0 = arith.constant 0 : index
    %c0_1 = arith.constant 0 : index
    %0 = vector.load %arg2[%c0, %c0_0, %c0_1] : memref<1x32x256xf32, #tpu.memory_space<vmem>>, vector<1x32x256xf32>
    %1 = vector.shape_cast %0 : vector<1x32x256xf32> to vector<32x256xf32>
    %2 = arith.truncf %1 : vector<32x256xf32> to vector<32x256xbf16>
    %c0_2 = arith.constant 0 : index
    %c0_3 = arith.constant 0 : index
    %c0_4 = arith.constant 0 : index
    %3 = vector.load %arg3[%c0_2, %c0_3, %c0_4] : memref<1x32x256xf32, #tpu.memory_space<vmem>>, vector<1x32x256xf32>
    %4 = vector.shape_cast %3 : vector<1x32x256xf32> to vector<32x256xf32>
    %5 = arith.truncf %4 : vector<32x256xf32> to vector<32x256xbf16>
    %c0_5 = arith.constant 0 : index
    %c0_6 = arith.constant 0 : index
    %6 = vector.load %arg4[%c0_5, %c0_6] : memref<32x32xbf16, #tpu.memory_space<vmem>>, vector<32x32xbf16>
    %cst = arith.constant dense<0.000000e+00> : vector<32x256xf32>
    %7 = tpu.matmul %6, %2, %cst {dimension_numbers = #tpu.dot_dimension_numbers<[1], [0], [0], [1], [0, 0, 1, 1], [], []>} : vector<32x32xbf16>, vector<32x256xbf16>, vector<32x256xf32> -> vector<32x256xf32>
    %c0_7 = arith.constant 0 : index
    %c0_8 = arith.constant 0 : index
    %8 = vector.load %arg5[%c0_7, %c0_8] : memref<32x1xf32, #tpu.memory_space<vmem>>, vector<32x1xf32>
    %9 = vector.broadcast %8 : vector<32x1xf32> to vector<32x256xf32>
    %10 = arith.addf %7, %9 : vector<32x256xf32>
    %11 = vector.extract_strided_slice %10 {offsets = [0, 0], sizes = [17, 256], strides = [1, 1]} : vector<32x256xf32> to vector<17x256xf32>
    %12 = arith.truncf %11 : vector<17x256xf32> to vector<17x256xbf16>
    %c0_9 = arith.constant 0 : index
    %c0_10 = arith.constant 0 : index
    %c0_11 = arith.constant 0 : index
    %13 = vector.load %arg8[%c0_9, %c0_10, %c0_11] : memref<1x17x256xbf16, #tpu.memory_space<vmem>>, vector<1x17x256xbf16>
    %14 = vector.shape_cast %13 : vector<1x17x256xbf16> to vector<17x256xbf16>
    %15 = vector.shape_cast %12 : vector<17x256xbf16> to vector<1x17x256xbf16>
    tpu.vector_store %arg8[%c0_9, %c0_10, %c0_11], %15 {strides = array<i32>} : memref<1x17x256xbf16, #tpu.memory_space<vmem>>, vector<1x17x256xbf16>,
    %c0_12 = arith.constant 0 : index
    %c0_13 = arith.constant 0 : index
    %16 = vector.load %arg6[%c0_12, %c0_13] : memref<64x32xbf16, #tpu.memory_space<vmem>>, vector<64x32xbf16>
    %cst_14 = arith.constant dense<0.000000e+00> : vector<64x256xf32>
    %17 = tpu.matmul %16, %5, %cst_14 {dimension_numbers = #tpu.dot_dimension_numbers<[1], [0], [0], [1], [0, 0, 1, 1], [], []>} : vector<64x32xbf16>, vector<32x256xbf16>, vector<64x256xf32> -> vector<64x256xf32>
    %c0_15 = arith.constant 0 : index
    %c0_16 = arith.constant 0 : index
    %18 = vector.load %arg7[%c0_15, %c0_16] : memref<64x1xf32, #tpu.memory_space<vmem>>, vector<64x1xf32>
    %19 = vector.broadcast %18 : vector<64x1xf32> to vector<64x256xf32>
    %20 = arith.addf %17, %19 : vector<64x256xf32>
    %21 = arith.truncf %20 : vector<64x256xf32> to vector<64x256xbf16>
    %c0_17 = arith.constant 0 : index
    %c0_18 = arith.constant 0 : index
    %c0_19 = arith.constant 0 : index
    %22 = vector.load %arg9[%c0_17, %c0_18, %c0_19] : memref<1x64x256xbf16, #tpu.memory_space<vmem>>, vector<1x64x256xbf16>
    %23 = vector.shape_cast %22 : vector<1x64x256xbf16> to vector<64x256xbf16>
    %24 = vector.shape_cast %21 : vector<64x256xbf16> to vector<1x64x256xbf16>
    tpu.vector_store %arg9[%c0_17, %c0_18, %c0_19], %24 {strides = array<i32>} : memref<1x64x256xbf16, #tpu.memory_space<vmem>>, vector<1x64x256xbf16>,
    return
  }
  func.func @transform_0(%arg0: i32, %arg1: i32) -> (i32, i32, i32) {
    %c0_i32 = arith.constant 0 : i32
    %c0_i32_0 = arith.constant 0 : i32
    return %arg0, %c0_i32, %arg1 : i32, i32, i32
  }
  func.func @transform_1(%arg0: i32, %arg1: i32) -> (i32, i32, i32) {
    %c0_i32 = arith.constant 0 : i32
    %c0_i32_0 = arith.constant 0 : i32
    return %arg0, %c0_i32, %arg1 : i32, i32, i32
  }
  func.func @transform_2(%arg0: i32, %arg1: i32) -> (i32, i32) {
    %c0_i32 = arith.constant 0 : i32
    %c0_i32_0 = arith.constant 0 : i32
    %c0_i32_1 = arith.constant 0 : i32
    return %c0_i32, %c0_i32_0 : i32, i32
  }
  func.func @transform_3(%arg0: i32, %arg1: i32) -> (i32, i32) {
    %c0_i32 = arith.constant 0 : i32
    %c0_i32_0 = arith.constant 0 : i32
    %c0_i32_1 = arith.constant 0 : i32
    return %c0_i32, %c0_i32_0 : i32, i32
  }
  func.func @transform_4(%arg0: i32, %arg1: i32) -> (i32, i32) {
    %c0_i32 = arith.constant 0 : i32
    %c0_i32_0 = arith.constant 0 : i32
    %c0_i32_1 = arith.constant 0 : i32
    return %c0_i32, %c0_i32_0 : i32, i32
  }
  func.func @transform_5(%arg0: i32, %arg1: i32) -> (i32, i32) {
    %c0_i32 = arith.constant 0 : i32
    %c0_i32_0 = arith.constant 0 : i32
    %c0_i32_1 = arith.constant 0 : i32
    return %c0_i32, %c0_i32_0 : i32, i32
  }
  func.func @transform_6(%arg0: i32, %arg1: i32) -> (i32, i32, i32) {
    %c0_i32 = arith.constant 0 : i32
    %c0_i32_0 = arith.constant 0 : i32
    return %arg0, %c0_i32, %arg1 : i32, i32, i32
  }
  func.func @transform_7(%arg0: i32, %arg1: i32) -> (i32, i32, i32) {
    %c0_i32 = arith.constant 0 : i32
    %c0_i32_0 = arith.constant 0 : i32
    return %arg0, %c0_i32, %arg1 : i32, i32, i32
  }
}

</mosaic_0001>

<llo_original>
// kernel: tpu_custom_call.1
$region0: #{tpu_custom_call.1}
  #allocation0 [shape = 'u32[]', space=smem, size = 0x4, offset = 0x4, fixed_abs, tag = 'smem constant byte address 0x4 - core index']
  #allocation1 [shape = 'u32[144,128]{1,0:T(1,128)}', space=vmem, size = 0x12000, scoped, tag = 'internal scratch']
  %s0 = inlined_call_operand.vmem [shape: f32[2,32,256], index: 0, kind: input, shape index: {}]
  %s1 = inlined_call_operand.hbm [shape: f32[2,32,256], index: 1, kind: input, shape index: {}]
  %s2 = inlined_call_operand.hbm [shape: bf16[32,32], index: 2, kind: input, shape index: {}]
  %s3 = inlined_call_operand.vmem [shape: f32[32,1], index: 3, kind: input, shape index: {}]
  %s4 = inlined_call_operand.vmem [shape: bf16[64,32], index: 4, kind: input, shape index: {}]
  %s5 = inlined_call_operand.vmem [shape: f32[64,1], index: 5, kind: input, shape index: {}]
  %s6 = inlined_call_operand.vmem [shape: bf16[2,17,256], index: 6, kind: output, shape index: {0}]
  %s7 = inlined_call_operand.hbm [shape: bf16[2,64,256], index: 7, kind: output, shape index: {1}]
  %8 = xla_tuple %s6, %s7
  %s9 = sld [smem:[#allocation0]]
  $region73: #{tpu_custom_call.1} parent=0
    _
  %s11 = ssub.s32 1, %s9
  %s12 = scalar_select 0, %s11, %s9
  $region1: #{tpu_custom_call.1} parent=0
    #allocation2 [shape = 'u8[65536]{0}', space=vmem, size = 0x10000, scoped, tag = 'input window, operand 1']
    #allocation3 [shape = 's32[2]{0}', space=sflag, size = 0x8, scoped, tag = 'scoped memory for tpu_custom_call.1']
    #allocation4 [shape = 's32[2]{0}', space=sflag, size = 0x8, scoped, tag = 'scoped memory for tpu_custom_call.1']
    #allocation5 [shape = 'u8[8192]{0}', space=vmem, size = 0x2000, scoped, tag = 'input window, operand 2, single buffered']
    #allocation6 [shape = 's32[1]{0}', space=sflag, size = 0x4, scoped, tag = 'scoped memory for tpu_custom_call.1']
    #allocation7 [shape = 'u8[65536]{0}', space=vmem, size = 0x10000, scoped, tag = 'output window, operand 1']
    %13 = vsyncpa [#allocation3], 0
    %s14 = scalar_lea.sflag [#allocation3], 1
    %15 = vsyncpa %s14, 0
    %16 = vsyncpa [#allocation6], 0
    %17 = vsyncpa [#allocation4], 0
    %s18 = scalar_lea.sflag [#allocation4], 1
    %19 = vsyncpa %s18, 0
    loop: start=0, step=1, limit=4
    $region2: #{tpu_custom_call.1} parent=1 // loop_pre_header
      _
    $region3: #{tpu_custom_call.1} parent=1 // loop_header
      %s21 = sphi 0, %s25
      %p22 = scmp.ge.s32.totalorder %s21, 4
      %s28 = sphi 0, %s40
      %s29 = sphi 0, %s36
      %s30 = sphi 0, %s28
      %s31 = sphi 0, %s29
      %s32 = sphi 0, %s30
      %s33 = sphi 0, %s31
      %s45 = sphi 0, %s47
      %s48 = sphi 0, %s45
      %s49 = sphi 0, %s48
      %s65 = sphi 0, %s49
      %s73 = sphi 0, %s75
      %s76 = sphi 0, %s73
      %s77 = sphi 0, %s76
      %s93 = sphi 0, %s77
      %s97 = sphi 0, %s97
      %s99 = sphi 0, %s97
      %s100 = sphi 0, %s99
      %s114 = sphi 0, %s100
      %s118 = sphi 0, %s118
      %s120 = sphi 0, %s118
      %s121 = sphi 0, %s120
      %s135 = sphi 0, %s121
      %s139 = sphi 0, %s139
      %s141 = sphi 0, %s139
      %s142 = sphi 0, %s141
      %s156 = sphi 0, %s142
      %s160 = sphi 0, %s160
      %s162 = sphi 0, %s160
      %s163 = sphi 0, %s162
      %s177 = sphi 0, %s163
      %s185 = sphi 0, %s187
      %s188 = sphi 0, %s185
      %s189 = sphi 0, %s188
      %s205 = sphi 0, %s189
      %s213 = sphi 0, %s215
      %s216 = sphi 0, %s213
      %s217 = sphi 0, %s216
      %s233 = sphi 0, %s217
    $region4: #{tpu_custom_call.1} parent=1 // loop_header_branch
      %24 = sbr.rel (%p22) target = $region8
    $region5: #{tpu_custom_call.1} parent=1 // loop_body
      %s26 = ssub.s32 %s21, 1
      %s27 = ssub.s32 %s21, 2
      %s34 = sadd.s32 1, %s29
      %p35 = scmp.ge.s32.totalorder %s34, 1
      %s36 = scalar_select %p35, 0, %s34
      %s37 = sadd.s32 1, %s28
      %s38 = scalar_select %p35, %s37, %s28
      %p39 = scmp.ge.s32.totalorder %s38, 2
      %s40 = scalar_select %p39, 0, %s38
      %s41 = ssub.s32 %s28, %s40
      %s42 = ssub.s32 %s29, %s36
      %s43 = sor.u32 %s41, %s42
      %p44 = scmp.eq.s32.totalorder %s43, 0
      %s46 = sadd.s32 %s45, 1
      %s47 = scalar_select %p44, %s45, %s46
      %p50 = pneg %p44
      %p51 = scmp.eq.s32.totalorder %s21, 1
      %p52 = por %p50, %p51
      %p53 = scmp.ne.s32.totalorder %s45, %s48
      %p54 = scmp.eq.s32.totalorder %s21, 0
      %p55 = por %p53, %p54
      %p56 = scmp.ne.s32.totalorder %s45, %s48
      %p57 = scmp.eq.s32.totalorder %s26, 1
      %p58 = por %p56, %p57
      %p59 = scmp.ne.s32.totalorder %s48, %s49
      %p60 = scmp.eq.s32.totalorder %s26, 0
      %p61 = por %p59, %p60
      %p62 = scmp.ne.s32.totalorder %s48, %s49
      %p63 = scmp.eq.s32.totalorder %s27, 1
      %p64 = por %p62, %p63
      %p66 = scmp.ne.s32.totalorder %s49, %s65
      %p67 = scmp.eq.s32.totalorder %s27, 0
      %p68 = por %p66, %p67
      %s69 = ssub.s32 %s28, %s40
      %s70 = ssub.s32 %s29, %s36
      %s71 = sor.u32 %s69, %s70
      %p72 = scmp.eq.s32.totalorder %s71, 0
      %s74 = sadd.s32 %s73, 1
      %s75 = scalar_select %p72, %s73, %s74
      %p78 = pneg %p72
      %p79 = scmp.eq.s32.totalorder %s21, 1
      %p80 = por %p78, %p79
      %p81 = scmp.ne.s32.totalorder %s73, %s76
      %p82 = scmp.eq.s32.totalorder %s21, 0
      %p83 = por %p81, %p82
      %p84 = scmp.ne.s32.totalorder %s73, %s76
      %p85 = scmp.eq.s32.totalorder %s26, 1
      %p86 = por %p84, %p85
      %p87 = scmp.ne.s32.totalorder %s76, %s77
      %p88 = scmp.eq.s32.totalorder %s26, 0
      %p89 = por %p87, %p88
      %p90 = scmp.ne.s32.totalorder %s76, %s77
      %p91 = scmp.eq.s32.totalorder %s27, 1
      %p92 = por %p90, %p91
      %p94 = scmp.ne.s32.totalorder %s77, %s93
      %p95 = scmp.eq.s32.totalorder %s27, 0
      %p96 = por %p94, %p95
      %s98 = sadd.s32 %s97, 1
      %p101 = scmp.eq.s32.totalorder %s21, 1
      %p102 = scmp.ne.s32.totalorder %s97, %s99
      %p103 = scmp.eq.s32.totalorder %s21, 0
      %p104 = por %p102, %p103
      %p105 = scmp.ne.s32.totalorder %s97, %s99
      %p106 = scmp.eq.s32.totalorder %s26, 1
      %p107 = por %p105, %p106
      %p108 = scmp.ne.s32.totalorder %s99, %s100
      %p109 = scmp.eq.s32.totalorder %s26, 0
      %p110 = por %p108, %p109
      %p111 = scmp.ne.s32.totalorder %s99, %s100
      %p112 = scmp.eq.s32.totalorder %s27, 1
      %p113 = por %p111, %p112
      %p115 = scmp.ne.s32.totalorder %s100, %s114
      %p116 = scmp.eq.s32.totalorder %s27, 0
      %p117 = por %p115, %p116
      %s119 = sadd.s32 %s118, 1
      %p122 = scmp.eq.s32.totalorder %s21, 1
      %p123 = scmp.ne.s32.totalorder %s118, %s120
      %p124 = scmp.eq.s32.totalorder %s21, 0
      %p125 = por %p123, %p124
      %p126 = scmp.ne.s32.totalorder %s118, %s120
      %p127 = scmp.eq.s32.totalorder %s26, 1
      %p128 = por %p126, %p127
      %p129 = scmp.ne.s32.totalorder %s120, %s121
      %p130 = scmp.eq.s32.totalorder %s26, 0
      %p131 = por %p129, %p130
      %p132 = scmp.ne.s32.totalorder %s120, %s121
      %p133 = scmp.eq.s32.totalorder %s27, 1
      %p134 = por %p132, %p133
      %p136 = scmp.ne.s32.totalorder %s121, %s135
      %p137 = scmp.eq.s32.totalorder %s27, 0
      %p138 = por %p136, %p137
      %s140 = sadd.s32 %s139, 1
      %p143 = scmp.eq.s32.totalorder %s21, 1
      %p144 = scmp.ne.s32.totalorder %s139, %s141
      %p145 = scmp.eq.s32.totalorder %s21, 0
      %p146 = por %p144, %p145
      %p147 = scmp.ne.s32.totalorder %s139, %s141
      %p148 = scmp.eq.s32.totalorder %s26, 1
      %p149 = por %p147, %p148
      %p150 = scmp.ne.s32.totalorder %s141, %s142
      %p151 = scmp.eq.s32.totalorder %s26, 0
      %p152 = por %p150, %p151
      %p153 = scmp.ne.s32.totalorder %s141, %s142
      %p154 = scmp.eq.s32.totalorder %s27, 1
      %p155 = por %p153, %p154
      %p157 = scmp.ne.s32.totalorder %s142, %s156
      %p158 = scmp.eq.s32.totalorder %s27, 0
      %p159 = por %p157, %p158
      %s161 = sadd.s32 %s160, 1
      %p164 = scmp.eq.s32.totalorder %s21, 1
      %p165 = scmp.ne.s32.totalorder %s160, %s162
      %p166 = scmp.eq.s32.totalorder %s21, 0
      %p167 = por %p165, %p166
      %p168 = scmp.ne.s32.totalorder %s160, %s162
      %p169 = scmp.eq.s32.totalorder %s26, 1
      %p170 = por %p168, %p169
      %p171 = scmp.ne.s32.totalorder %s162, %s163
      %p172 = scmp.eq.s32.totalorder %s26, 0
      %p173 = por %p171, %p172
      %p174 = scmp.ne.s32.totalorder %s162, %s163
      %p175 = scmp.eq.s32.totalorder %s27, 1
      %p176 = por %p174, %p175
      %p178 = scmp.ne.s32.totalorder %s163, %s177
      %p179 = scmp.eq.s32.totalorder %s27, 0
      %p180 = por %p178, %p179
      %s181 = ssub.s32 %s28, %s40
      %s182 = ssub.s32 %s29, %s36
      %s183 = sor.u32 %s181, %s182
      %p184 = scmp.eq.s32.totalorder %s183, 0
      %s186 = sadd.s32 %s185, 1
      %s187 = scalar_select %p184, %s185, %s186
      %p190 = pneg %p184
      %p191 = scmp.eq.s32.totalorder %s21, 1
      %p192 = por %p190, %p191
      %p193 = scmp.ne.s32.totalorder %s185, %s188
      %p194 = scmp.eq.s32.totalorder %s21, 0
      %p195 = por %p193, %p194
      %p196 = scmp.ne.s32.totalorder %s185, %s188
      %p197 = scmp.eq.s32.totalorder %s26, 1
      %p198 = por %p196, %p197
      %p199 = scmp.ne.s32.totalorder %s188, %s189
      %p200 = scmp.eq.s32.totalorder %s26, 0
      %p201 = por %p199, %p200
      %p202 = scmp.ne.s32.totalorder %s188, %s189
      %p203 = scmp.eq.s32.totalorder %s27, 1
      %p204 = por %p202, %p203
      %p206 = scmp.ne.s32.totalorder %s189, %s205
      %p207 = scmp.eq.s32.totalorder %s27, 0
      %p208 = por %p206, %p207
      %s209 = ssub.s32 %s28, %s40
      %s210 = ssub.s32 %s29, %s36
      %s211 = sor.u32 %s209, %s210
      %p212 = scmp.eq.s32.totalorder %s211, 0
      %s214 = sadd.s32 %s213, 1
      %s215 = scalar_select %p212, %s213, %s214
      %p218 = pneg %p212
      %p219 = scmp.eq.s32.totalorder %s21, 1
      %p220 = por %p218, %p219
      %p221 = scmp.ne.s32.totalorder %s213, %s216
      %p222 = scmp.eq.s32.totalorder %s21, 0
      %p223 = por %p221, %p222
      %p224 = scmp.ne.s32.totalorder %s213, %s216
      %p225 = scmp.eq.s32.totalorder %s26, 1
      %p226 = por %p224, %p225
      %p227 = scmp.ne.s32.totalorder %s216, %s217
      %p228 = scmp.eq.s32.totalorder %s26, 0
      %p229 = por %p227, %p228
      %p230 = scmp.ne.s32.totalorder %s216, %s217
      %p231 = scmp.eq.s32.totalorder %s27, 1
      %p232 = por %p230, %p231
      %p234 = scmp.ne.s32.totalorder %s217, %s233
      %p235 = scmp.eq.s32.totalorder %s27, 0
      %p236 = por %p234, %p235
      %p237 = scmp.le.s32.totalorder 1, %s21
      %p238 = scmp.lt.s32.totalorder %s21, 3
      %p239 = pnand %p237, %p238
      %p240 = pneg %p239
      // Predicated region
      $region9: #{tpu_custom_call.1} parent=5 // pred_check
        _
      $region10: #{tpu_custom_call.1} parent=5 // pred_check_branch
        %242 = sbr.rel (%p239) target = $region12
      $region11: #{tpu_custom_call.1} parent=5 // pred_region
        %s243 = ssub.s32 %s21, 1
        // Predicated region
        $region13: #{tpu_custom_call.1} parent=11 // pred_check
          %p244 = pneg %p110
        $region14: #{tpu_custom_call.1} parent=11 // pred_check_branch
          %246 = sbr.rel (%p244) target = $region16
        $region15: #{tpu_custom_call.1} parent=11 // pred_region
          %s248 = ssub.s32 256, 256
          %249 = vsyncadd [#allocation6], %s248
          %s250 = sshll.u32 [#allocation5], 4
          %s251 = int_to_ptr.vmem [resolvable:$true] %s250
          %256 = dma.hbm_to_vmem [thread:$0]  %s2, 256, %s251, [#allocation6], 64, 64, 4
        $region16: #{tpu_custom_call.1} parent=11 // pred_fallthru
          _
        // Predicated region
        $region17: #{tpu_custom_call.1} parent=11 // pred_check
          %p257 = pneg %p131
        $region18: #{tpu_custom_call.1} parent=11 // pred_check_branch
          %259 = sbr.rel (%p257) target = $region20
        $region19: #{tpu_custom_call.1} parent=11 // pred_region
          _
        $region20: #{tpu_custom_call.1} parent=11 // pred_fallthru
          _
        // Predicated region
        $region21: #{tpu_custom_call.1} parent=11 // pred_check
          %p260 = pneg %p152
        $region22: #{tpu_custom_call.1} parent=11 // pred_check_branch
          %262 = sbr.rel (%p260) target = $region24
        $region23: #{tpu_custom_call.1} parent=11 // pred_region
          _
        $region24: #{tpu_custom_call.1} parent=11 // pred_fallthru
          _
        // Predicated region
        $region25: #{tpu_custom_call.1} parent=11 // pred_check
          %p263 = pneg %p173
        $region26: #{tpu_custom_call.1} parent=11 // pred_check_branch
          %265 = sbr.rel (%p263) target = $region28
        $region27: #{tpu_custom_call.1} parent=11 // pred_region
          _
        $region28: #{tpu_custom_call.1} parent=11 // pred_fallthru
          _
      $region12: #{tpu_custom_call.1} parent=5 // pred_fallthru
        _
      %p266 = scmp.lt.s32.totalorder %s21, 2
      // Predicated region
      $region29: #{tpu_custom_call.1} parent=5 // pred_check
        %p267 = pneg %p266
      $region30: #{tpu_custom_call.1} parent=5 // pred_check_branch
        %269 = sbr.rel (%p267) target = $region32
      $region31: #{tpu_custom_call.1} parent=5 // pred_region
        // Predicated region
        $region33: #{tpu_custom_call.1} parent=31 // pred_check
          %p270 = pneg %p55
        $region34: #{tpu_custom_call.1} parent=31 // pred_check_branch
          %272 = sbr.rel (%p270) target = $region36
        $region35: #{tpu_custom_call.1} parent=31 // pred_region
          %s273 = smul.u32 2, %s29
          %p274 = scmp.lt.s32.totalorder %s28, 1
          %s275 = scalar_select %p274, %s28, 1
          %p276 = scmp.lt.s32.totalorder %s273, 1
          %s277 = scalar_select %p276, %s273, 1
          %s278 = smul.addr %s275, 8
          %s279 = sadd.s32 %s277, %s278
          %s280 = smul.addr %s279, 8
          %s281 = scalar_lea.vmem %s0, %s280
          %s282 = smul.u32 2, %s29
        $region36: #{tpu_custom_call.1} parent=31 // pred_fallthru
          _
        // Predicated region
        $region37: #{tpu_custom_call.1} parent=31 // pred_check
          %p283 = pneg %p83
        $region38: #{tpu_custom_call.1} parent=31 // pred_check_branch
          %285 = sbr.rel (%p283) target = $region40
        $region39: #{tpu_custom_call.1} parent=31 // pred_region
          %s286 = sand.u32 %s73, 1
          %s287 = scalar_lea.sflag [#allocation3], %s286
          %s288 = sand.u32 %s73, 1
          %s289 = smul.addr %s288, 64
          %s290 = scalar_lea.vmem [#allocation2], %s289
          %s291 = smul.u32 2, %s29
          %s293 = ssub.s32 1024, 1024
          %294 = vsyncadd %s287, %s293
          %s295 = smul.addr %s28, 8
          %s296 = sadd.s32 %s291, %s295
          %s297 = smul.addr %s296, 128
          %s298 = scalar_lea.hbm %s1, %s297
          %s299 = sshll.u32 %s290, 4
          %s300 = int_to_ptr.vmem [resolvable:$true] %s299
          %305 = dma.hbm_to_vmem [thread:$0]  %s298, 1024, %s300, %s287, 256, 256, 16
        $region40: #{tpu_custom_call.1} parent=31 // pred_fallthru
          _
      $region32: #{tpu_custom_call.1} parent=5 // pred_fallthru
        _
      %p306 = scmp.le.s32.totalorder 1, %s21
      %p307 = scmp.lt.s32.totalorder %s21, 3
      %p308 = pnand %p306, %p307
      %p309 = pneg %p308
      // Predicated region
      $region41: #{tpu_custom_call.1} parent=5 // pred_check
        _
      $region42: #{tpu_custom_call.1} parent=5 // pred_check_branch
        %311 = sbr.rel (%p308) target = $region44
      $region43: #{tpu_custom_call.1} parent=5 // pred_region
        %s312 = ssub.s32 %s21, 1
        %s313 = sand.u32 %s76, 1
        %s314 = scalar_lea.sflag [#allocation3], %s313
        %s315 = sand.u32 %s76, 1
        %s316 = smul.addr %s315, 64
        %s317 = scalar_lea.vmem [#allocation2], %s316
        // Predicated region
        $region45: #{tpu_custom_call.1} parent=43 // pred_check
          %p318 = pneg %p89
        $region46: #{tpu_custom_call.1} parent=43 // pred_check_branch
          %320 = sbr.rel (%p318) target = $region48
        $region47: #{tpu_custom_call.1} parent=43 // pred_region
          %321 = dma.done %s314, 1024
        $region48: #{tpu_custom_call.1} parent=43 // pred_fallthru
          _
        // Predicated region
        $region49: #{tpu_custom_call.1} parent=43 // pred_check
          %p322 = pneg %p110
        $region50: #{tpu_custom_call.1} parent=43 // pred_check_branch
          %324 = sbr.rel (%p322) target = $region52
        $region51: #{tpu_custom_call.1} parent=43 // pred_region
          %325 = dma.done [#allocation6], 256
        $region52: #{tpu_custom_call.1} parent=43 // pred_fallthru
          _
        %s326 = smul.u32 2, %s31
        %p327 = scmp.lt.s32.totalorder %s30, 1
        %s328 = scalar_select %p327, %s30, 1
        %p329 = scmp.lt.s32.totalorder %s326, 1
        %s330 = scalar_select %p329, %s326, 1
        %s331 = smul.addr %s328, 8
        %s332 = sadd.s32 %s330, %s331
        %s333 = smul.addr %s332, 8
        %s334 = scalar_lea.vmem %s0, %s333
        %p335 = pneg %p61
        %p336 = pneg %p58
        %s337 = sand.u32 %s76, 1
        %s338 = scalar_lea.sflag [#allocation3], %s337
        %s339 = sand.u32 %s76, 1
        %s340 = smul.addr %s339, 64
        %s341 = scalar_lea.vmem [#allocation2], %s340
        %p342 = pneg %p89
        %p343 = pneg %p86
        %p344 = pneg %p110
        %p345 = pneg %p107
        %p346 = pneg %p131
        %p347 = pneg %p128
        %p348 = pneg %p152
        %p349 = pneg %p149
        %p350 = pneg %p173
        %p351 = pneg %p170
        %p352 = pneg %p201
        %p353 = pneg %p198
        %s354 = smul.u32 2, %s31
        %p355 = scmp.lt.s32.totalorder %s30, 1
        %s356 = scalar_select %p355, %s30, 1
        %p357 = scmp.lt.s32.totalorder %s354, 1
        %s358 = scalar_select %p357, %s354, 1
        %s359 = smul.addr %s356, 6
        %s360 = sadd.s32 %s358, %s359
        %s361 = smul.addr %s360, 4
        %s362 = scalar_lea.vmem %s6, %s361
        %p363 = pneg %p229
        %p364 = pneg %p226
        %s365 = sand.u32 %s216, 1
        %s366 = scalar_lea.sflag [#allocation4], %s365
        %s367 = sand.u32 %s216, 1
        %s368 = smul.addr %s367, 64
        %s369 = scalar_lea.vmem [#allocation7], %s368
        %s370 = smul.u32 2, %s31
        %p371 = scmp.lt.s32.totalorder %s30, 1
        %s372 = scalar_select %p371, %s30, 1
        %p373 = scmp.lt.s32.totalorder %s370, 1
        %s374 = scalar_select %p373, %s370, 1
        %s375 = smul.addr %s372, 8
        %s376 = sadd.s32 %s374, %s375
        %s377 = smul.addr %s376, 8
        %s378 = scalar_lea.vmem %s0, %s377
        %s379 = smul.u32 2, %s31
        %s380 = smul.u32 2, %s31
        %s381 = smul.u32 2, %s31
        %p382 = scmp.lt.s32.totalorder %s30, 1
        %s383 = scalar_select %p382, %s30, 1
        %p384 = scmp.lt.s32.totalorder %s381, 1
        %s385 = scalar_select %p384, %s381, 1
        %s386 = smul.addr %s383, 6
        %s387 = sadd.s32 %s385, %s386
        %s388 = smul.addr %s387, 4
        %s389 = scalar_lea.vmem %s6, %s388
        %s390 = smul.u32 2, %s31
        %s391 = smul.u32 2, %s31
        %v393 = vld [vmem:[%s378] sm:$0xff]
        %v394 = vld [vmem:[%s378 + $0x8] sm:$0xff]
        %v395 = vld [vmem:[%s378 + $0x10] sm:$0xff]
        %v396 = vld [vmem:[%s378 + $0x18] sm:$0xff]
        %v397 = vld [vmem:[%s378 + $0x20] sm:$0xff]
        %v398 = vld [vmem:[%s378 + $0x28] sm:$0xff]
        %v399 = vld [vmem:[%s378 + $0x30] sm:$0xff]
        %v400 = vld [vmem:[%s378 + $0x38] sm:$0xff]
        %v401 = vpack.c.bf16 %v395, %v393
        %v402 = vpack.c.bf16 %v396, %v394
        %v403 = vpack.c.bf16 %v399, %v397
        %v404 = vpack.c.bf16 %v400, %v398
        %v405 = vld [vmem:[%s317] sm:$0xff]
        %v406 = vld [vmem:[%s317 + $0x8] sm:$0xff]
        %v407 = vld [vmem:[%s317 + $0x10] sm:$0xff]
        %v408 = vld [vmem:[%s317 + $0x18] sm:$0xff]
        %v409 = vld [vmem:[%s317 + $0x20] sm:$0xff]
        %v410 = vld [vmem:[%s317 + $0x28] sm:$0xff]
        %v411 = vld [vmem:[%s317 + $0x30] sm:$0xff]
        %v412 = vld [vmem:[%s317 + $0x38] sm:$0xff]
        %v413 = vpack.c.bf16 %v407, %v405
        %v414 = vpack.c.bf16 %v408, %v406
        %v415 = vpack.c.bf16 %v411, %v409
        %v416 = vpack.c.bf16 %v412, %v410
        %v417 = vld [vmem:[#allocation5] sm:$0xf]
        %v418 = vld [vmem:[#allocation5 + $0x4] sm:$0xf]
        %v419 = vld [vmem:[#allocation5 + $0x8] sm:$0xf]
        %v420 = vld [vmem:[#allocation5 + $0xc] sm:$0xf]
        %v421 = vld [vmem:[%s3] sm:$0xff]
        %v422 = vld [vmem:[%s3 + $0x8] sm:$0xff]
        %v423 = vld [vmem:[%s3 + $0x10] sm:$0xff]
        %v424 = vld [vmem:[%s3 + $0x18] sm:$0xff]
        %426 = vset.pattern.permute.xlu0 0
        %427 = vperm.xlu0 %426, %v421
        %v428 = vpop.permute.xlu0 %427
        %431 = vset.pattern.permute.xlu0 0
        %432 = vperm.xlu0 %431, %v422
        %v433 = vpop.permute.xlu0 %432
        %436 = vset.pattern.permute.xlu0 0
        %437 = vperm.xlu0 %436, %v423
        %v438 = vpop.permute.xlu0 %437
        %441 = vset.pattern.permute.xlu0 0
        %442 = vperm.xlu0 %441, %v424
        %v443 = vpop.permute.xlu0 %442
        %v448 = vunpack.c.l.b16 %v417
        %v449 = vunpack.c.l.b16 %v418
        %v450 = vunpack.c.l.b16 %v419
        %v451 = vunpack.c.l.b16 %v420
        %v452 = vpack.c.b16 %v449, %v448
        %v453 = vpack.c.b16 %v451, %v450
        %vm454 = vcmask 261120
        %v456 = vsel %vm454, %v452, 0
        %v459 = vsel %vm454, %v453, 0
        %461 = vmatprep.subr.bf16.mxu0 0
        %462 = vmatpush1.bf16.msra.mxu0 0
        %463 = vmatprep.subr.bf16.mxu0 0
        %464 = vmatpush1.bf16.msra.mxu0 0
        %465 = vmatprep.subr.bf16.mxu0 0
        %466 = vmatpush1.bf16.msra.mxu0 0
        %467 = vmatprep.subr.bf16.mxu0 0
        %468 = vmatpush1.bf16.msra.mxu0 0
        %469 = vmatprep.subr.bf16.mxu0 0
        %470 = vmatpush1.bf16.msra.mxu0 0
        %471 = vmatprep.subr.bf16.mxu0 0
        %472 = vmatpush1.bf16.msra.mxu0 0
        %473 = vmatprep.subr.bf16.mxu0 %v404
        %474 = vmatpush1.bf16.msra.mxu0 %v403
        %475 = vmatprep.subr.bf16.mxu0 %v402
        %476 = vmatpush1.bf16.msra.mxu0 %v401
        %477 = vmatprep.subr.bf16.mxu0 0
        %478 = vmatpush2.bf16.msra.mxu0 0
        %479 = vmatprep.subr.bf16.mxu0 0
        %480 = vmatpush2.bf16.msra.mxu0 0
        %481 = vmatprep.subr.bf16.mxu0 0
        %482 = vmatpush2.bf16.msra.mxu0 0
        %483 = vmatprep.subr.bf16.mxu0 0
        %484 = vmatpush2.bf16.msra.mxu0 0
        %485 = vmatprep.subr.bf16.mxu0 0
        %486 = vmatpush2.bf16.msra.mxu0 0
        %487 = vmatprep.subr.bf16.mxu0 0
        %488 = vmatpush2.bf16.msra.mxu0 0
        %489 = vmatprep.subr.bf16.mxu0 0
        %490 = vmatpush2.bf16.msra.mxu0 0
        %491 = vmatprep.subr.bf16.mxu0 0
        %492 = vmatpush2.bf16.msra.mxu0 0
        %493 = vmatprep.mubr.bf16.mxu0 0
        %494 = vmatmul.mubr.bf16.gmra.mxu0 %v456
        %v495 = vpop.f32.mrf.mxu0
        %v496 = vadd.f32 %v428, %v495
        %v497 = vpop.f32.mrf.mxu0
        %v498 = vadd.f32 %v428, %v497
        %v499 = vpop.f32.mrf.mxu0
        %v500 = vadd.f32 %v433, %v499
        %v501 = vpop.f32.mrf.mxu0
        %v502 = vadd.f32 %v433, %v501
        %503 = vmatprep.mubr.bf16.mxu0 0
        %504 = vmatmul.mubr.bf16.gmra.mxu0 %v459
        %v505 = vpop.f32.mrf.mxu0
        %v506 = vadd.f32 %v438, %v505
        %v507 = vpop.f32.mrf.mxu0
        %v508 = vadd.f32 %v438, %v507
        %v509 = vpop.f32.mrf.mxu0
        %v510 = vpop.f32.mrf.mxu0
        %511 = vdwg.mxu0
        %v512 = vpack.c.bf16 %v500, %v496
        %v513 = vpack.c.bf16 %v502, %v498
        %v514 = vpack.c.bf16 %v506, %v506
        %v515 = vpack.c.bf16 %v508, %v508
        %v520 = vunpack.c.l.b16 %v512
        %v521 = vunpack.c.l.b16 %v513
        %v522 = vunpack.c.h.b16 %v512
        %v523 = vunpack.c.h.b16 %v513
        %v524 = vunpack.c.l.b16 %v514
        %v525 = vunpack.c.l.b16 %v515
        %v526 = vpack.c.b16 %v521, %v520
        %v527 = vpack.c.b16 %v523, %v522
        %v528 = vpack.c.b16 %v525, %v524
        %532 = vst [vmem:[%s389] sm:$0xff] %v526
        %533 = vst [vmem:[%s389 + $0x8] sm:$0xff] %v527
        %vm534 = vcmask 1040384
        %vm535 = vsmask.f32 256
        %vm536 = vmand %vm534, %vm535
        %vm537 = vcmask 1044484
        %vm538 = vsmask.f32 4352
        %vm539 = vmand %vm537, %vm538
        %vm540 = vmor %vm539, %vm536
        %v541 = vld [vmem:[%s389 + $0x10] sm:$0x11]
        %v542 = vsel %vm540, %v528, %v541
        %543 = vst [vmem:[%s389 + $0x10] sm:$0x11] %v542
        %v544 = vld [vmem:[%s4] sm:$0xf]
        %v545 = vld [vmem:[%s4 + $0x4] sm:$0xf]
        %v546 = vld [vmem:[%s4 + $0x8] sm:$0xf]
        %v547 = vld [vmem:[%s4 + $0xc] sm:$0xf]
        %v548 = vld [vmem:[%s4 + $0x10] sm:$0xf]
        %v549 = vld [vmem:[%s4 + $0x14] sm:$0xf]
        %v550 = vld [vmem:[%s4 + $0x18] sm:$0xf]
        %v551 = vld [vmem:[%s4 + $0x1c] sm:$0xf]
        %v552 = vld [vmem:[%s5] sm:$0xff]
        %v553 = vld [vmem:[%s5 + $0x8] sm:$0xff]
        %v554 = vld [vmem:[%s5 + $0x10] sm:$0xff]
        %v555 = vld [vmem:[%s5 + $0x18] sm:$0xff]
        %v556 = vld [vmem:[%s5 + $0x20] sm:$0xff]
        %v557 = vld [vmem:[%s5 + $0x28] sm:$0xff]
        %v558 = vld [vmem:[%s5 + $0x30] sm:$0xff]
        %v559 = vld [vmem:[%s5 + $0x38] sm:$0xff]
        %561 = vset.pattern.permute.xlu0 0
        %562 = vperm.xlu0 %561, %v552
        %v563 = vpop.permute.xlu0 %562
        %566 = vset.pattern.permute.xlu0 0
        %567 = vperm.xlu0 %566, %v553
        %v568 = vpop.permute.xlu0 %567
        %571 = vset.pattern.permute.xlu0 0
        %572 = vperm.xlu0 %571, %v554
        %v573 = vpop.permute.xlu0 %572
        %576 = vset.pattern.permute.xlu0 0
        %577 = vperm.xlu0 %576, %v555
        %v578 = vpop.permute.xlu0 %577
        %581 = vset.pattern.permute.xlu0 0
        %582 = vperm.xlu0 %581, %v556
        %v583 = vpop.permute.xlu0 %582
        %586 = vset.pattern.permute.xlu0 0
        %587 = vperm.xlu0 %586, %v557
        %v588 = vpop.permute.xlu0 %587
        %591 = vset.pattern.permute.xlu0 0
        %592 = vperm.xlu0 %591, %v558
        %v593 = vpop.permute.xlu0 %592
        %596 = vset.pattern.permute.xlu0 0
        %597 = vperm.xlu0 %596, %v559
        %v598 = vpop.permute.xlu0 %597
        %v608 = vunpack.c.l.b16 %v544
        %v609 = vunpack.c.l.b16 %v545
        %v610 = vunpack.c.l.b16 %v546
        %v611 = vunpack.c.l.b16 %v547
        %v612 = vunpack.c.l.b16 %v548
        %v613 = vunpack.c.l.b16 %v549
        %v614 = vunpack.c.l.b16 %v550
        %v615 = vunpack.c.l.b16 %v551
        %v616 = vpack.c.b16 %v609, %v608
        %v617 = vpack.c.b16 %v611, %v610
        %v618 = vpack.c.b16 %v613, %v612
        %v619 = vpack.c.b16 %v615, %v614
        %v621 = vsel %vm454, %v616, 0
        %v624 = vsel %vm454, %v617, 0
        %v627 = vsel %vm454, %v618, 0
        %v630 = vsel %vm454, %v619, 0
        %632 = vmatprep.subr.bf16.mxu0 0
        %633 = vmatpush1.bf16.msra.mxu0 0
        %634 = vmatprep.subr.bf16.mxu0 0
        %635 = vmatpush1.bf16.msra.mxu0 0
        %636 = vmatprep.subr.bf16.mxu0 0
        %637 = vmatpush1.bf16.msra.mxu0 0
        %638 = vmatprep.subr.bf16.mxu0 0
        %639 = vmatpush1.bf16.msra.mxu0 0
        %640 = vmatprep.subr.bf16.mxu0 0
        %641 = vmatpush1.bf16.msra.mxu0 0
        %642 = vmatprep.subr.bf16.mxu0 0
        %643 = vmatpush1.bf16.msra.mxu0 0
        %644 = vmatprep.subr.bf16.mxu0 %v416
        %645 = vmatpush1.bf16.msra.mxu0 %v415
        %646 = vmatprep.subr.bf16.mxu0 %v414
        %647 = vmatpush1.bf16.msra.mxu0 %v413
        %648 = vmatprep.subr.bf16.mxu0 0
        %649 = vmatpush2.bf16.msra.mxu0 0
        %650 = vmatprep.subr.bf16.mxu0 0
        %651 = vmatpush2.bf16.msra.mxu0 0
        %652 = vmatprep.subr.bf16.mxu0 0
        %653 = vmatpush2.bf16.msra.mxu0 0
        %654 = vmatprep.subr.bf16.mxu0 0
        %655 = vmatpush2.bf16.msra.mxu0 0
        %656 = vmatprep.subr.bf16.mxu0 0
        %657 = vmatpush2.bf16.msra.mxu0 0
        %658 = vmatprep.subr.bf16.mxu0 0
        %659 = vmatpush2.bf16.msra.mxu0 0
        %660 = vmatprep.subr.bf16.mxu0 0
        %661 = vmatpush2.bf16.msra.mxu0 0
        %662 = vmatprep.subr.bf16.mxu0 0
        %663 = vmatpush2.bf16.msra.mxu0 0
        %664 = vmatprep.mubr.bf16.mxu0 0
        %665 = vmatmul.mubr.bf16.gmra.mxu0 %v621
        %v666 = vpop.f32.mrf.mxu0
        %v667 = vadd.f32 %v563, %v666
        %v668 = vpop.f32.mrf.mxu0
        %v669 = vadd.f32 %v563, %v668
        %v670 = vpop.f32.mrf.mxu0
        %v671 = vadd.f32 %v568, %v670
        %v672 = vpop.f32.mrf.mxu0
        %v673 = vadd.f32 %v568, %v672
        %674 = vmatprep.mubr.bf16.mxu0 0
        %675 = vmatmul.mubr.bf16.gmra.mxu0 %v624
        %v676 = vpop.f32.mrf.mxu0
        %v677 = vadd.f32 %v573, %v676
        %v678 = vpop.f32.mrf.mxu0
        %v679 = vadd.f32 %v573, %v678
        %v680 = vpop.f32.mrf.mxu0
        %v681 = vadd.f32 %v578, %v680
        %v682 = vpop.f32.mrf.mxu0
        %v683 = vadd.f32 %v578, %v682
        %684 = vmatprep.mubr.bf16.mxu0 0
        %685 = vmatmul.mubr.bf16.gmra.mxu0 %v627
        %v686 = vpop.f32.mrf.mxu0
        %v687 = vadd.f32 %v583, %v686
        %v688 = vpop.f32.mrf.mxu0
        %v689 = vadd.f32 %v583, %v688
        %v690 = vpop.f32.mrf.mxu0
        %v691 = vadd.f32 %v588, %v690
        %v692 = vpop.f32.mrf.mxu0
        %v693 = vadd.f32 %v588, %v692
        %694 = vmatprep.mubr.bf16.mxu0 0
        %695 = vmatmul.mubr.bf16.gmra.mxu0 %v630
        %v696 = vpop.f32.mrf.mxu0
        %v697 = vadd.f32 %v593, %v696
        %v698 = vpop.f32.mrf.mxu0
        %v699 = vadd.f32 %v593, %v698
        %v700 = vpop.f32.mrf.mxu0
        %v701 = vadd.f32 %v598, %v700
        %v702 = vpop.f32.mrf.mxu0
        %v703 = vadd.f32 %v598, %v702
        %704 = vdwg.mxu0
        %v705 = vpack.c.bf16 %v671, %v667
        %v706 = vpack.c.bf16 %v673, %v669
        %v707 = vpack.c.bf16 %v681, %v677
        %v708 = vpack.c.bf16 %v683, %v679
        %v709 = vpack.c.bf16 %v691, %v687
        %v710 = vpack.c.bf16 %v693, %v689
        %v711 = vpack.c.bf16 %v701, %v697
        %v712 = vpack.c.bf16 %v703, %v699
        %v721 = vunpack.c.l.b16 %v705
        %v722 = vunpack.c.l.b16 %v706
        %v723 = vunpack.c.h.b16 %v705
        %v724 = vunpack.c.h.b16 %v706
        %v725 = vunpack.c.l.b16 %v707
        %v726 = vunpack.c.l.b16 %v708
        %v727 = vunpack.c.h.b16 %v707
        %v728 = vunpack.c.h.b16 %v708
        %v729 = vunpack.c.l.b16 %v709
        %v730 = vunpack.c.l.b16 %v710
        %v731 = vunpack.c.h.b16 %v709
        %v732 = vunpack.c.h.b16 %v710
        %v733 = vunpack.c.l.b16 %v711
        %v734 = vunpack.c.l.b16 %v712
        %v735 = vunpack.c.h.b16 %v711
        %v736 = vunpack.c.h.b16 %v712
        %v737 = vpack.c.b16 %v722, %v721
        %v738 = vpack.c.b16 %v724, %v723
        %v739 = vpack.c.b16 %v726, %v725
        %v740 = vpack.c.b16 %v728, %v727
        %v741 = vpack.c.b16 %v730, %v729
        %v742 = vpack.c.b16 %v732, %v731
        %v743 = vpack.c.b16 %v734, %v733
        %v744 = vpack.c.b16 %v736, %v735
        %753 = vst [vmem:[%s369] sm:$0xff] %v737
        %754 = vst [vmem:[%s369 + $0x8] sm:$0xff] %v738
        %755 = vst [vmem:[%s369 + $0x10] sm:$0xff] %v739
        %756 = vst [vmem:[%s369 + $0x18] sm:$0xff] %v740
        %757 = vst [vmem:[%s369 + $0x20] sm:$0xff] %v741
        %758 = vst [vmem:[%s369 + $0x28] sm:$0xff] %v742
        %759 = vst [vmem:[%s369 + $0x30] sm:$0xff] %v743
        %760 = vst [vmem:[%s369 + $0x38] sm:$0xff] %v744
        %s761 = smul.u32 2, %s31
        %p762 = scmp.lt.s32.totalorder %s30, 1
        %s763 = scalar_select %p762, %s30, 1
        %p764 = scmp.lt.s32.totalorder %s761, 1
        %s765 = scalar_select %p764, %s761, 1
        %s766 = smul.addr %s763, 6
        %s767 = sadd.s32 %s765, %s766
        %s768 = smul.addr %s767, 4
        %s769 = scalar_lea.vmem %s6, %s768
        %s770 = sand.u32 %s216, 1
        %s771 = scalar_lea.sflag [#allocation4], %s770
        %s772 = sand.u32 %s216, 1
        %s773 = smul.addr %s772, 64
        %s774 = scalar_lea.vmem [#allocation7], %s773
        // Predicated region
        $region53: #{tpu_custom_call.1} parent=43 // pred_check
          %p775 = pneg %p198
        $region54: #{tpu_custom_call.1} parent=43 // pred_check_branch
          %777 = sbr.rel (%p775) target = $region56
        $region55: #{tpu_custom_call.1} parent=43 // pred_region
          %s778 = smul.u32 2, %s31
        $region56: #{tpu_custom_call.1} parent=43 // pred_fallthru
          _
        // Predicated region
        $region57: #{tpu_custom_call.1} parent=43 // pred_check
          %p779 = pneg %p226
        $region58: #{tpu_custom_call.1} parent=43 // pred_check_branch
          %781 = sbr.rel (%p779) target = $region60
        $region59: #{tpu_custom_call.1} parent=43 // pred_region
          %s782 = smul.u32 2, %s31
          %s784 = ssub.s32 1024, 1024
          %785 = vsyncadd %s771, %s784
          %s786 = smul.addr %s30, 16
          %s787 = sadd.s32 %s782, %s786
          %s788 = smul.addr %s787, 64
          %s789 = scalar_lea.hbm %s7, %s788
          %s790 = sshll.u32 %s774, 4
          %s791 = int_to_ptr.vmem [resolvable:$true] %s790
          %796 = dma.vmem_to_hbm [thread:$0]  %s791, 1024, %s789, %s771, 128, 128, 8
        $region60: #{tpu_custom_call.1} parent=43 // pred_fallthru
          _
      $region44: #{tpu_custom_call.1} parent=5 // pred_fallthru
        _
      %p797 = scmp.le.s32.totalorder 2, %s21
      // Predicated region
      $region61: #{tpu_custom_call.1} parent=5 // pred_check
        %p798 = pneg %p797
      $region62: #{tpu_custom_call.1} parent=5 // pred_check_branch
        %800 = sbr.rel (%p798) target = $region64
      $region63: #{tpu_custom_call.1} parent=5 // pred_region
        %s801 = ssub.s32 %s21, 2
        // Predicated region
        $region65: #{tpu_custom_call.1} parent=63 // pred_check
          %p802 = pneg %p204
        $region66: #{tpu_custom_call.1} parent=63 // pred_check_branch
          %804 = sbr.rel (%p802) target = $region68
        $region67: #{tpu_custom_call.1} parent=63 // pred_region
          %s805 = smul.u32 2, %s33
          %p806 = scmp.lt.s32.totalorder %s32, 1
          %s807 = scalar_select %p806, %s32, 1
          %p808 = scmp.lt.s32.totalorder %s805, 1
          %s809 = scalar_select %p808, %s805, 1
          %s810 = smul.addr %s807, 6
          %s811 = sadd.s32 %s809, %s810
          %s812 = smul.addr %s811, 4
          %s813 = scalar_lea.vmem %s6, %s812
        $region68: #{tpu_custom_call.1} parent=63 // pred_fallthru
          _
        // Predicated region
        $region69: #{tpu_custom_call.1} parent=63 // pred_check
          %p814 = pneg %p232
        $region70: #{tpu_custom_call.1} parent=63 // pred_check_branch
          %816 = sbr.rel (%p814) target = $region72
        $region71: #{tpu_custom_call.1} parent=63 // pred_region
          %s817 = sand.u32 %s217, 1
          %s818 = scalar_lea.sflag [#allocation4], %s817
          %s819 = sand.u32 %s217, 1
          %s820 = smul.addr %s819, 64
          %s821 = scalar_lea.vmem [#allocation7], %s820
          %822 = dma.done %s818, 1024
        $region72: #{tpu_custom_call.1} parent=63 // pred_fallthru
          _
      $region64: #{tpu_custom_call.1} parent=5 // pred_fallthru
        _
    $region6: #{tpu_custom_call.1} parent=1 // loop_footer
      %s25 = sadd.s32 1, %s21
    $region7: #{tpu_custom_call.1} parent=1 // loop_footer_branch
      %20 = sbr.rel target = $region3
    $region8: #{tpu_custom_call.1} parent=1 // loop_exit
      _
    %823 = vsyncpa [#allocation3], 1
    %s824 = scalar_lea.sflag [#allocation3], 1
    %825 = vsyncpa %s824, 1
    %826 = vsyncpa [#allocation6], 1
    %827 = vsyncpa [#allocation4], 1
    %s828 = scalar_lea.sflag [#allocation4], 1
    %829 = vsyncpa %s828, 1

</llo_original>
